<compile_context>
chip_gen: v6e
topology: v6e:2x2x1
jax: 0.10.0
libtpu: 0.0.40
codegen_flags: <defaults>
</compile_context>

<pallas_src>
import jax
import jax.numpy as jnp
import numpy as np
from jax.experimental import pallas as pl
from jax.experimental.pallas import tpu as pltpu

N, W = 4, 8           # batch, width (C = H = 1)
D1, D2, D3 = 6, 4, 8  # linear1 out, linear2 out, linear3 out

# Slab layout ((16, 128) f32 == 2 vregs):
#   rows 0:8,  cols 0:4   W21 = w1.T @ w2.T          (fused linear1∘linear2 weight)
#   rows 8:16, cols 4:12  w3.T + I                    (linear3 weight, v6-add folded)
#   rows 0:8,  cols 12:16 c21 = b1 @ w2.T             (sublane-replicated bias)
#   rows 0:8,  cols 16:24 b3                          (sublane-replicated bias)
#   rows 0:8,  cols 26:34 conv weight scalar          (replicated (8,8) block)
#   rows 0:8,  cols 34:42 conv bias scalar            (replicated (8,8) block)


def layer_kernel(x_ref, p_ref, o_ref):
    x = x_ref[...]                                        # (4, 8)

    # 1x1 conv with 1 in / 1 out channel == per-element affine; params are
    # pre-broadcast (4,8)-aligned windows, so this is two plain VPU ops.
    v1 = x * p_ref[0:4, 26:34] + p_ref[0:4, 34:42]        # (4, 8)
    v6 = jnp.maximum(v1, 0.0)                             # (4, 8) relu(flatten(v1))

    # One merged MXU push: [v1 | v6] @ [[W21, 0], [0, w3.T + I]]  -> (4, 12)
    lhs = jnp.concatenate([v1, v6], axis=-1)              # (4, 16)
    big = jnp.dot(lhs, p_ref[:, 0:12],
                  preferred_element_type=jnp.float32)     # (4, 12)

    v5 = big[:, 0:4] + p_ref[0:4, 12:16]                  # (4, 4)  v1@W21 + c21
    s = big[:, 4:12] + p_ref[0:4, 16:24]                  # (4, 8)  v6 + v6@w3.T + b3

    # torch.matmul(v5, v6): per batch b, row v5[b] (1,4) @ v6 (4,8)
    v7 = jnp.dot(v5, v6, preferred_element_type=jnp.float32)   # (4, 8)

    # out2d[4*b + j, :] = v7[b, :] + s[j, :]  — sublane/lane-dense (16, 8) tile whose
    # row-major order equals the PyTorch (4, 1, 4, 8) broadcast result.
    o_ref[...] = jnp.concatenate(
        [v7[0:1, :] + s, v7[1:2, :] + s, v7[2:3, :] + s, v7[3:4, :] + s], axis=0)


def pack_params(params):
    """One-time host-side packing (hoists all per-call transposes / fusions)."""
    cw, cb, w1, b1, w2, w3, b3 = [np.asarray(p, dtype=np.float32) for p in params]
    w21 = w1.T @ w2.T                               # (8, 4) fused linear1∘linear2
    c21 = b1 @ w2.T                                 # (4,)   fused linear1∘linear2 bias
    slab = np.zeros((16, 128), np.float32)
    slab[0:8, 0:4] = w21                            # block-diagonal merged RHS, top
    slab[8:16, 4:12] = w3.T + np.eye(8, dtype=np.float32)   # bottom, 'v6 +' folded
    slab[0:8, 12:16] = c21[None, :]                 # sublane-replicated biases
    slab[0:8, 16:24] = b3[None, :]
    slab[0:8, 26:34] = cw                           # conv scalars pre-broadcast (8,8)
    slab[0:8, 34:42] = cb
    return jnp.asarray(slab)


@jax.jit
def layer_forward(x_nchw, param_slab):
    """x_nchw: (4, 1, 1, 8) f32, param_slab: (16, 128) f32. Returns (4, 1, 4, 8)."""
    x2d = x_nchw.reshape(N, W)                      # squeeze of unit dims (free)
    vmem = pl.BlockSpec(memory_space=pltpu.MemorySpace.VMEM)
    out2d = pl.pallas_call(
        layer_kernel,
        out_shape=jax.ShapeDtypeStruct((N * N, W), jnp.float32),
        in_specs=[vmem, vmem],
        out_specs=vmem,
        cost_estimate=pl.CostEstimate(
            flops=2112, transcendentals=0,
            bytes_accessed=4 * (N * W + 16 * 128 + N * N * W)),
    )(x2d, param_slab)
    return out2d.reshape(N, 1, N, W)                # row-major identical → free


def reference_forward(x_nchw, params):
    """Exact-f32 numpy reference matching the (unfused) PyTorch graph."""
    cw, cb, w1, b1, w2, w3, b3 = [np.asarray(p, dtype=np.float32) for p in params]
    x2d = np.asarray(x_nchw, dtype=np.float32).reshape(N, W)
    v1 = x2d * cw + cb                # conv2d(1,1,(1,1))
    v3 = v1 @ w1.T + b1               # linear1
    v6 = np.maximum(v1, 0.0)          # relu(flatten(v1))
    v5 = v3 @ w2.T                    # linear2 (no bias)
    v7 = v5 @ v6                      # torch.matmul(v5, v6)
    v9 = v6 @ w3.T + b3               # linear3(flatten(v6))
    s = v6 + v9                       # v8 + v9
    return (v7[:, None, :] + s[None, :, :]).reshape(N, 1, N, W)


def init_params(key):
    ks = jax.random.split(key, 7)

    # Deterministic synthetic init (PyTorch-style uniform bounds).
    def u(k, shape, fan_in):
        b = 1.0 / np.sqrt(fan_in)
        return jax.random.uniform(k, shape, jnp.float32, -b, b)

    cw = u(ks[0], (), 1)               # Conv2d(1,1,(1,1)) weight (scalar)
    cb = u(ks[1], (), 1)               # conv bias (scalar)
    w1 = u(ks[2], (D1, W), W)          # Linear(8, 6) weight
    b1 = u(ks[3], (D1,), W)
    w2 = u(ks[4], (D2, D1), D1)        # Linear(6, 4, bias=False)
    w3 = u(ks[5], (D3, W), W)          # Linear(8, 8)
    b3 = u(ks[6], (D3,), W)
    return (cw, cb, w1, b1, w2, w3, b3)


if __name__ == "__main__":
    key = jax.random.PRNGKey(0)
    kx, kp = jax.random.split(key)
    x = jax.random.normal(kx, (N, 1, 1, W), dtype=jnp.float32)  # (4,1,1,8) NCHW
    params = init_params(kp)
    slab = pack_params(params)          # one-time packing, reused every call

    out = layer_forward(x, slab)
    out = jax.block_until_ready(out)

    ref = reference_forward(x, params)
    assert out.shape == (4, 1, 4, 8)
    np.testing.assert_allclose(np.asarray(out), ref, rtol=1e-4, atol=1e-5)

    print("KERNEL_OK")
</pallas_src>

<mosaic_0001>
module attributes {stable_mosaic.version = 11 : i64} {
  func.func @layer_kernel(%arg0: memref<4x8xf32, #tpu.memory_space<vmem>>, %arg1: memref<16x128xf32, #tpu.memory_space<vmem>>, %arg2: memref<16x8xf32, #tpu.memory_space<vmem>>) attributes {dimension_semantics = [], scalar_prefetch = 0 : i64, scratch_operands = 0 : i64, tpu.core_type = #tpu.core_type<tc>} {
    %c0 = arith.constant 0 : index
    %c0_0 = arith.constant 0 : index
    %0 = vector.load %arg0[%c0, %c0_0] : memref<4x8xf32, #tpu.memory_space<vmem>>, vector<4x8xf32>
    %c0_1 = arith.constant 0 : index
    %c26 = arith.constant 26 : index
    %1 = vector.load %arg1[%c0_1, %c26] : memref<16x128xf32, #tpu.memory_space<vmem>>, vector<4x8xf32>
    %2 = arith.mulf %0, %1 : vector<4x8xf32>
    %c0_2 = arith.constant 0 : index
    %c34 = arith.constant 34 : index
    %3 = vector.load %arg1[%c0_2, %c34] : memref<16x128xf32, #tpu.memory_space<vmem>>, vector<4x8xf32>
    %4 = arith.addf %2, %3 : vector<4x8xf32>
    %cst = arith.constant 0.000000e+00 : f32
    %5 = vector.broadcast %cst : f32 to vector<4x8xf32>
    %6 = arith.maximumf %4, %5 : vector<4x8xf32>
    %7 = tpu.concatenate %4, %6 in 1 : vector<4x8xf32>, vector<4x8xf32> -> vector<4x16xf32>
    %c0_3 = arith.constant 0 : index
    %c0_4 = arith.constant 0 : index
    %8 = vector.load %arg1[%c0_3, %c0_4] : memref<16x128xf32, #tpu.memory_space<vmem>>, vector<16x12xf32>
    %cst_5 = arith.constant dense<0.000000e+00> : vector<4x12xf32>
    %9 = tpu.matmul %7, %8, %cst_5 {dimension_numbers = #tpu.dot_dimension_numbers<[1], [0], [0], [1], [0, 0, 1, 1], [], []>} : vector<4x16xf32>, vector<16x12xf32>, vector<4x12xf32> -> vector<4x12xf32>
    %10 = vector.extract_strided_slice %9 {offsets = [0, 0], sizes = [4, 4], strides = [1, 1]} : vector<4x12xf32> to vector<4x4xf32>
    %c0_6 = arith.constant 0 : index
    %c12 = arith.constant 12 : index
    %11 = vector.load %arg1[%c0_6, %c12] : memref<16x128xf32, #tpu.memory_space<vmem>>, vector<4x4xf32>
    %12 = arith.addf %10, %11 : vector<4x4xf32>
    %13 = vector.extract_strided_slice %9 {offsets = [0, 4], sizes = [4, 8], strides = [1, 1]} : vector<4x12xf32> to vector<4x8xf32>
    %c0_7 = arith.constant 0 : index
    %c16 = arith.constant 16 : index
    %14 = vector.load %arg1[%c0_7, %c16] : memref<16x128xf32, #tpu.memory_space<vmem>>, vector<4x8xf32>
    %15 = arith.addf %13, %14 : vector<4x8xf32>
    %cst_8 = arith.constant dense<0.000000e+00> : vector<4x8xf32>
    %16 = tpu.matmul %12, %6, %cst_8 {dimension_numbers = #tpu.dot_dimension_numbers<[1], [0], [0], [1], [0, 0, 1, 1], [], []>} : vector<4x4xf32>, vector<4x8xf32>, vector<4x8xf32> -> vector<4x8xf32>
    %17 = vector.extract_strided_slice %16 {offsets = [0, 0], sizes = [1, 8], strides = [1, 1]} : vector<4x8xf32> to vector<1x8xf32>
    %18 = vector.broadcast %17 : vector<1x8xf32> to vector<4x8xf32>
    %19 = arith.addf %18, %15 : vector<4x8xf32>
    %20 = vector.extract_strided_slice %16 {offsets = [1, 0], sizes = [1, 8], strides = [1, 1]} : vector<4x8xf32> to vector<1x8xf32>
    %21 = vector.broadcast %20 : vector<1x8xf32> to vector<4x8xf32>
    %22 = arith.addf %21, %15 : vector<4x8xf32>
    %23 = vector.extract_strided_slice %16 {offsets = [2, 0], sizes = [1, 8], strides = [1, 1]} : vector<4x8xf32> to vector<1x8xf32>
    %24 = vector.broadcast %23 : vector<1x8xf32> to vector<4x8xf32>
    %25 = arith.addf %24, %15 : vector<4x8xf32>
    %26 = vector.extract_strided_slice %16 {offsets = [3, 0], sizes = [1, 8], strides = [1, 1]} : vector<4x8xf32> to vector<1x8xf32>
    %27 = vector.broadcast %26 : vector<1x8xf32> to vector<4x8xf32>
    %28 = arith.addf %27, %15 : vector<4x8xf32>
    %29 = tpu.concatenate %19, %22, %25, %28 in 0 : vector<4x8xf32>, vector<4x8xf32>, vector<4x8xf32>, vector<4x8xf32> -> vector<16x8xf32>
    %c0_9 = arith.constant 0 : index
    %c0_10 = arith.constant 0 : index
    %30 = vector.load %arg2[%c0_9, %c0_10] : memref<16x8xf32, #tpu.memory_space<vmem>>, vector<16x8xf32>
    tpu.vector_store %arg2[%c0_9, %c0_10], %29 {strides = array<i32>} : memref<16x8xf32, #tpu.memory_space<vmem>>, vector<16x8xf32>,
    return
  }
}

</mosaic_0001>

<llo_original>
// kernel: layer_forward.1
$region0: #{layer_forward.1}
  #allocation0 [shape = 'u32[]', space=smem, size = 0x4, offset = 0x4, fixed_abs, tag = 'smem constant byte address 0x4 - core index']
  #allocation1 [shape = 'u32[144,128]{1,0:T(1,128)}', space=vmem, size = 0x12000, scoped, tag = 'internal scratch']
  %s0 = inlined_call_operand.hbm [shape: f32[4,8], index: 0, kind: input, shape index: {}]
  %s1 = inlined_call_operand.hbm [shape: f32[16,128], index: 1, kind: input, shape index: {}]
  %s2 = inlined_call_operand.hbm [shape: f32[16,8], index: 2, kind: output, shape index: {}]
  %s3 = sld [smem:[#allocation0]]
  $region26: #{layer_forward.1} parent=0
    _
  %s5 = ssub.s32 1, %s3
  %s6 = scalar_select 0, %s5, %s3
  $region1: #{layer_forward.1} parent=0
    #allocation2 [shape = 'u8[2048]{0}', space=vmem, size = 0x800, scoped, tag = 'input window, operand 0, single buffered']
    #allocation3 [shape = 's32[1]{0}', space=sflag, size = 0x4, scoped, tag = 'scoped memory for layer_forward.1']
    #allocation4 [shape = 's32[1]{0}', space=sflag, size = 0x4, scoped, tag = 'scoped memory for layer_forward.1']
    #allocation5 [shape = 'u8[8192]{0}', space=vmem, size = 0x2000, scoped, tag = 'input window, operand 1, single buffered']
    #allocation6 [shape = 's32[1]{0}', space=sflag, size = 0x4, scoped, tag = 'scoped memory for layer_forward.1']
    #allocation7 [shape = 'u8[8192]{0}', space=vmem, size = 0x2000, scoped, tag = 'output window, operand 0, single buffered']
    %7 = vsyncpa [#allocation3], 0
    %8 = vsyncpa [#allocation6], 0
    %9 = vsyncpa [#allocation4], 0
    // Predicated region
    $region2: #{layer_forward.1} parent=1 // pred_check
      _
    $region3: #{layer_forward.1} parent=1 // pred_check_branch
      %11 = sbr.rel (0) target = $region5
    $region4: #{layer_forward.1} parent=1 // pred_region
      %s13 = ssub.s32 64, 64
      %14 = vsyncadd [#allocation3], %s13
      %s16 = sshll.u32 [#allocation2], 4
      %s17 = int_to_ptr.vmem [resolvable:$true] %s16
      %19 = dma.hbm_to_vmem [thread:$0]  %s0, 64, %s17, [#allocation3]
    $region5: #{layer_forward.1} parent=1 // pred_fallthru
      _
    // Predicated region
    $region6: #{layer_forward.1} parent=1 // pred_check
      _
    $region7: #{layer_forward.1} parent=1 // pred_check_branch
      %21 = sbr.rel (0) target = $region9
    $region8: #{layer_forward.1} parent=1 // pred_region
      %s23 = ssub.s32 256, 256
      %24 = vsyncadd [#allocation6], %s23
      %s25 = sshll.u32 [#allocation5], 4
      %s26 = int_to_ptr.vmem [resolvable:$true] %s25
      %31 = dma.hbm_to_vmem [thread:$0]  %s1, 256, %s26, [#allocation6], 128, 128, 8
    $region9: #{layer_forward.1} parent=1 // pred_fallthru
      _
    // Predicated region
    $region10: #{layer_forward.1} parent=1 // pred_check
      _
    $region11: #{layer_forward.1} parent=1 // pred_check_branch
      %33 = sbr.rel (0) target = $region13
    $region12: #{layer_forward.1} parent=1 // pred_region
      %34 = dma.done [#allocation3], 64
    $region13: #{layer_forward.1} parent=1 // pred_fallthru
      _
    // Predicated region
    $region14: #{layer_forward.1} parent=1 // pred_check
      _
    $region15: #{layer_forward.1} parent=1 // pred_check_branch
      %36 = sbr.rel (0) target = $region17
    $region16: #{layer_forward.1} parent=1 // pred_region
      %37 = dma.done [#allocation6], 256
    $region17: #{layer_forward.1} parent=1 // pred_fallthru
      _
    %v38 = vld [vmem:[#allocation2] sm:$0xf]
    %v39 = vld [vmem:[#allocation5] sm:$0xf]
    %41 = vrot.lane.b32.xlu0 %v39, 102
    %v42 = vpop.permute.xlu0 %41
    %v44 = vmul.f32 %v38, %v42
    %45 = vrot.lane.b32.xlu0 %v39, 94
    %v46 = vpop.permute.xlu0 %45
    %v48 = vadd.f32 %v44, %v46
    %v49 = vmax.f32 %v48, 0.0
    %51 = vrot.lane.b32.xlu0 %v49, 8
    %v52 = vpop.permute.xlu0 %51
    %vm54 = vcmask 64512
    %v55 = vsel %vm54, %v48, %v52
    %v56 = vld [vmem:[#allocation5] sm:$0xff]
    %v57 = vld [vmem:[#allocation5 + $0x8] sm:$0xff]
    %vm58 = vcmask 130048
    %v60 = vsel %vm58, %v55, 0
    %62 = vmatprep.subr.mxu0 0.0
    %63 = vmatpush1.msra.mxu0 0.0
    %64 = vmatprep.subr.mxu0 0.0
    %65 = vmatpush1.msra.mxu0 0.0
    %66 = vmatprep.subr.mxu0 0.0
    %67 = vmatpush1.msra.mxu0 0.0
    %68 = vmatprep.subr.mxu0 0.0
    %69 = vmatpush1.msra.mxu0 0.0
    %70 = vmatprep.subr.mxu0 0.0
    %71 = vmatpush1.msra.mxu0 0.0
    %72 = vmatprep.subr.mxu0 0.0
    %73 = vmatpush1.msra.mxu0 0.0
    %74 = vmatprep.subr.mxu0 0.0
    %75 = vmatpush1.msra.mxu0 0.0
    %76 = vmatprep.subr.mxu0 0.0
    %77 = vmatpush1.msra.mxu0 0.0
    %78 = vmatprep.subr.mxu0 0.0
    %79 = vmatpush1.msra.mxu0 0.0
    %80 = vmatprep.subr.mxu0 0.0
    %81 = vmatpush1.msra.mxu0 0.0
    %82 = vmatprep.subr.mxu0 0.0
    %83 = vmatpush1.msra.mxu0 0.0
    %84 = vmatprep.subr.mxu0 0.0
    %85 = vmatpush1.msra.mxu0 0.0
    %86 = vmatprep.subr.mxu0 0.0
    %87 = vmatpush1.msra.mxu0 0.0
    %88 = vmatprep.subr.mxu0 0.0
    %89 = vmatpush1.msra.mxu0 0.0
    %90 = vmatprep.subr.mxu0 0.0
    %91 = vmatpush1.msra.mxu0 %v57
    %92 = vmatprep.subr.mxu0 0.0
    %93 = vmatpush1.msra.mxu0 %v56
    %94 = vmatprep.subr.mxu0 0.0
    %95 = vmatpush2.msra.mxu0 0.0
    %96 = vmatprep.subr.mxu0 0.0
    %97 = vmatpush2.msra.mxu0 0.0
    %98 = vmatprep.subr.mxu0 0.0
    %99 = vmatpush2.msra.mxu0 0.0
    %100 = vmatprep.subr.mxu0 0.0
    %101 = vmatpush2.msra.mxu0 0.0
    %102 = vmatprep.subr.mxu0 0.0
    %103 = vmatpush2.msra.mxu0 0.0
    %104 = vmatprep.subr.mxu0 0.0
    %105 = vmatpush2.msra.mxu0 0.0
    %106 = vmatprep.subr.mxu0 0.0
    %107 = vmatpush2.msra.mxu0 0.0
    %108 = vmatprep.subr.mxu0 0.0
    %109 = vmatpush2.msra.mxu0 0.0
    %110 = vmatprep.subr.mxu0 0.0
    %111 = vmatpush2.msra.mxu0 0.0
    %112 = vmatprep.subr.mxu0 0.0
    %113 = vmatpush2.msra.mxu0 0.0
    %114 = vmatprep.subr.mxu0 0.0
    %115 = vmatpush2.msra.mxu0 0.0
    %116 = vmatprep.subr.mxu0 0.0
    %117 = vmatpush2.msra.mxu0 0.0
    %118 = vmatprep.subr.mxu0 0.0
    %119 = vmatpush2.msra.mxu0 0.0
    %120 = vmatprep.subr.mxu0 0.0
    %121 = vmatpush2.msra.mxu0 0.0
    %122 = vmatprep.subr.mxu0 0.0
    %123 = vmatpush2.msra.mxu0 0.0
    %124 = vmatprep.subr.mxu0 0.0
    %125 = vmatpush2.msra.mxu0 0.0
    %126 = vmatprep.mubr.f32.mxu0 0.0
    %127 = vmatmul.mubr.f32.gmra.mxu0 %v60
    %v128 = vpop.f32.mrf.mxu0
    %v129 = vadd.f32 0.0, %v128
    %v130 = vpop.f32.mrf.mxu0
    %131 = vdwg.mxu0
    %132 = vrot.lane.b32.xlu0 %v39, 116
    %v133 = vpop.permute.xlu0 %132
    %v135 = vadd.f32 %v129, %v133
    %vm136 = vcmask 31744
    %v138 = vsel %vm136, %v135, 0
    %vm140 = vcmask 1043456
    %v141 = vsel %vm140, %v49, 0
    %143 = vmatprep.subr.mxu0 0.0
    %144 = vmatpush1.msra.mxu0 0.0
    %145 = vmatprep.subr.mxu0 0.0
    %146 = vmatpush1.msra.mxu0 0.0
    %147 = vmatprep.subr.mxu0 0.0
    %148 = vmatpush1.msra.mxu0 0.0
    %149 = vmatprep.subr.mxu0 0.0
    %150 = vmatpush1.msra.mxu0 0.0
    %151 = vmatprep.subr.mxu0 0.0
    %152 = vmatpush1.msra.mxu0 0.0
    %153 = vmatprep.subr.mxu0 0.0
    %154 = vmatpush1.msra.mxu0 0.0
    %155 = vmatprep.subr.mxu0 0.0
    %156 = vmatpush1.msra.mxu0 0.0
    %157 = vmatprep.subr.mxu0 0.0
    %158 = vmatpush1.msra.mxu0 0.0
    %159 = vmatprep.subr.mxu0 0.0
    %160 = vmatpush1.msra.mxu0 0.0
    %161 = vmatprep.subr.mxu0 0.0
    %162 = vmatpush1.msra.mxu0 0.0
    %163 = vmatprep.subr.mxu0 0.0
    %164 = vmatpush1.msra.mxu0 0.0
    %165 = vmatprep.subr.mxu0 0.0
    %166 = vmatpush1.msra.mxu0 0.0
    %167 = vmatprep.subr.mxu0 0.0
    %168 = vmatpush1.msra.mxu0 0.0
    %169 = vmatprep.subr.mxu0 0.0
    %170 = vmatpush1.msra.mxu0 0.0
    %171 = vmatprep.subr.mxu0 0.0
    %172 = vmatpush1.msra.mxu0 0.0
    %173 = vmatprep.subr.mxu0 0.0
    %174 = vmatpush1.msra.mxu0 %v141
    %175 = vmatprep.subr.mxu0 0.0
    %176 = vmatpush2.msra.mxu0 0.0
    %177 = vmatprep.subr.mxu0 0.0
    %178 = vmatpush2.msra.mxu0 0.0
    %179 = vmatprep.subr.mxu0 0.0
    %180 = vmatpush2.msra.mxu0 0.0
    %181 = vmatprep.subr.mxu0 0.0
    %182 = vmatpush2.msra.mxu0 0.0
    %183 = vmatprep.subr.mxu0 0.0
    %184 = vmatpush2.msra.mxu0 0.0
    %185 = vmatprep.subr.mxu0 0.0
    %186 = vmatpush2.msra.mxu0 0.0
    %187 = vmatprep.subr.mxu0 0.0
    %188 = vmatpush2.msra.mxu0 0.0
    %189 = vmatprep.subr.mxu0 0.0
    %190 = vmatpush2.msra.mxu0 0.0
    %191 = vmatprep.subr.mxu0 0.0
    %192 = vmatpush2.msra.mxu0 0.0
    %193 = vmatprep.subr.mxu0 0.0
    %194 = vmatpush2.msra.mxu0 0.0
    %195 = vmatprep.subr.mxu0 0.0
    %196 = vmatpush2.msra.mxu0 0.0
    %197 = vmatprep.subr.mxu0 0.0
    %198 = vmatpush2.msra.mxu0 0.0
    %199 = vmatprep.subr.mxu0 0.0
    %200 = vmatpush2.msra.mxu0 0.0
    %201 = vmatprep.subr.mxu0 0.0
    %202 = vmatpush2.msra.mxu0 0.0
    %203 = vmatprep.subr.mxu0 0.0
    %204 = vmatpush2.msra.mxu0 0.0
    %205 = vmatprep.subr.mxu0 0.0
    %206 = vmatpush2.msra.mxu0 0.0
    %207 = vmatprep.mubr.f32.mxu0 0.0
    %208 = vmatmul.mubr.f32.gmra.mxu0 %v138
    %v209 = vpop.f32.mrf.mxu0
    %v210 = vadd.f32 0.0, %v209
    %v211 = vpop.f32.mrf.mxu0
    %212 = vdwg.mxu0
    %v213 = vlaneseq
    %v214 = vshrl.u32 %v213, 7
    %v215 = vsub.s32 0, %v214
    %v216 = vrot.slane %v210, %v215
    %217 = vrot.lane.b32.xlu0 %v135, 124
    %v218 = vpop.permute.xlu0 %217
    %v220 = vadd.f32 %v216, %v218
    %v221 = vlaneseq
    %v222 = vshrl.u32 %v221, 7
    %v223 = vsub.s32 1, %v222
    %v224 = vrot.slane %v210, %v223
    %v225 = vadd.f32 %v224, %v218
    %v226 = vlaneseq
    %v227 = vshrl.u32 %v226, 7
    %v228 = vsub.s32 2, %v227
    %v229 = vrot.slane %v210, %v228
    %v230 = vadd.f32 %v229, %v218
    %v231 = vlaneseq
    %v232 = vshrl.u32 %v231, 7
    %v233 = vsub.s32 3, %v232
    %v234 = vrot.slane %v210, %v233
    %v235 = vadd.f32 %v234, %v218
    %v237 = vrot.slane %v225, 4
    %v240 = vrot.slane %v235, 4
    %v242 = vsel %vm140, %v220, %v237
    %v243 = vsel %vm140, %v230, %v240
    %244 = vst.msk [vmem:[#allocation7] sm:$0xff] %vm54, %v242
    %245 = vst.msk [vmem:[#allocation7 + $0x8] sm:$0xff] %vm54, %v243
    // Predicated region
    $region18: #{layer_forward.1} parent=1 // pred_check
      _
    $region19: #{layer_forward.1} parent=1 // pred_check_branch
      %247 = sbr.rel (0) target = $region21
    $region20: #{layer_forward.1} parent=1 // pred_region
      %s249 = ssub.s32 256, 256
      %250 = vsyncadd [#allocation4], %s249
      %s251 = sshll.u32 [#allocation7], 4
      %s252 = int_to_ptr.vmem [resolvable:$true] %s251
      %257 = dma.vmem_to_hbm [thread:$0]  %s252, 256, %s2, [#allocation4], 128, 128, 8
    $region21: #{layer_forward.1} parent=1 // pred_fallthru
      _
    // Predicated region
    $region22: #{layer_forward.1} parent=1 // pred_check
      _
    $region23: #{layer_forward.1} parent=1 // pred_check_branch
      %259 = sbr.rel (0) target = $region25
    $region24: #{layer_forward.1} parent=1 // pred_region
      %260 = dma.done [#allocation4], 256
    $region25: #{layer_forward.1} parent=1 // pred_fallthru
      _
    %261 = vsyncpa [#allocation3], 1
    %262 = vsyncpa [#allocation6], 1
    %263 = vsyncpa [#allocation4], 1

</llo_original>
